<compile_context>
chip_gen: v6e
topology: v6e:2x2x1
jax: 0.10.0
libtpu: 0.0.40
codegen_flags: <defaults>
</compile_context>

<pallas_src>
import jax
import jax.numpy as jnp
from jax.experimental import pallas as pl
from jax.experimental.pallas import tpu as pltpu

HIDDEN = 128
LANE = 128
SUBLANE = 8
NEG_BIG = -1e30  # padded-logit bias: exp() underflows to exactly 0 in f32


def _round_up(n, m):
    return ((n + m - 1) // m) * m


def policy_kernel(x_ref, w1_ref, b1_ref, w2_ref, b2_ref, o_ref):
    # h = relu(x @ W1 + b1); logits = h @ W2p + b2p; out = softmax(logits)
    x = x_ref[...].astype(jnp.bfloat16)                  # (bm, D_in)
    h = jnp.dot(x, w1_ref[...],                          # w1 already bf16
                preferred_element_type=jnp.float32)      # MXU, f32 accumulate
    h = jnp.maximum(h + b1_ref[...], 0.0)                # bias + ReLU in f32 (VPU)

    logits = jnp.dot(h.astype(jnp.bfloat16), w2_ref[...],  # w2 already bf16
                     preferred_element_type=jnp.float32)
    logits = logits + b2_ref[...]                        # padded lanes -> -1e30

    # numerically-stable softmax over the lane-dense (padded) last axis
    m = jnp.max(logits, axis=-1, keepdims=True)          # XLU reduce
    e = jnp.exp(logits - m)                              # EUP; padded lanes -> 0
    denom = jnp.sum(e, axis=-1, keepdims=True)
    o_ref[...] = e * pl.reciprocal(denom, approx=True)   # EUP vrcp


def policy_network_forward(x, w1, b1, w2, b2, *, block_rows=512):
    """x: (B, D_in); w1: (D_in, 128); b1: (1, 128); w2: (128, out_dim);
    b2: (1, out_dim).  Returns softmax probabilities, shape (B, out_dim), f32."""
    B, d_in = x.shape
    hidden = w1.shape[1]
    out_dim = w2.shape[1]
    out_pad = _round_up(max(out_dim, LANE), LANE)        # lane-dense output width

    # One-time wrapper-side prep: bf16 MXU feeds for the weights, and the
    # second layer padded to a full 128-lane slab.  Padded logit lanes get a
    # huge negative bias so they never leak into the softmax max/denominator.
    w1_bf = w1.astype(jnp.bfloat16)
    w2p = (jnp.zeros((hidden, out_pad), jnp.float32)
           .at[:, :out_dim].set(w2)).astype(jnp.bfloat16)
    b1f = b1.reshape(1, hidden).astype(jnp.float32)
    b2p = jnp.full((1, out_pad), NEG_BIG, jnp.float32).at[:, :out_dim].set(b2)

    # Row block: multiple of 8 sublanes, capped at block_rows.
    bm = max(SUBLANE, _round_up(min(block_rows, B), SUBLANE))
    b_pad = _round_up(B, bm)
    if b_pad != B:
        x = jnp.pad(x, ((0, b_pad - B), (0, 0)))
    num_blocks = b_pad // bm

    cost = pl.CostEstimate(
        flops=2 * b_pad * (d_in * hidden + hidden * out_pad),
        transcendentals=b_pad * out_pad,
        bytes_accessed=(4 * (b_pad * d_in + hidden + out_pad + b_pad * out_pad)
                        + 2 * (d_in * hidden + hidden * out_pad)),
    )
    out_shape = jax.ShapeDtypeStruct((b_pad, out_pad), jnp.float32)
    cparams_common = dict(vmem_limit_bytes=32 * 1024 * 1024)

    if num_blocks == 1:
        # Whole problem fits in VMEM: no grid, no pipeline machinery.
        out = pl.pallas_call(
            policy_kernel,
            out_shape=out_shape,
            in_specs=[pl.BlockSpec(memory_space=pltpu.MemorySpace.VMEM)] * 5,
            out_specs=pl.BlockSpec(memory_space=pltpu.MemorySpace.VMEM),
            compiler_params=pltpu.CompilerParams(**cparams_common),
            cost_estimate=cost,
        )(x, w1_bf, b1f, w2p, b2p)
    else:
        # Batch-tiled grid; weights/biases resident via constant index maps.
        out = pl.pallas_call(
            policy_kernel,
            out_shape=out_shape,
            grid=(num_blocks,),
            in_specs=[
                pl.BlockSpec((bm, d_in), lambda i: (i, 0)),
                pl.BlockSpec((d_in, hidden), lambda i: (0, 0)),
                pl.BlockSpec((1, hidden), lambda i: (0, 0)),
                pl.BlockSpec((hidden, out_pad), lambda i: (0, 0)),
                pl.BlockSpec((1, out_pad), lambda i: (0, 0)),
            ],
            out_specs=pl.BlockSpec((bm, out_pad), lambda i: (i, 0)),
            compiler_params=pltpu.CompilerParams(
                dimension_semantics=("parallel",), **cparams_common),
            cost_estimate=cost,
        )(x, w1_bf, b1f, w2p, b2p)

    return out[:B, :out_dim]


def init_params(key, input_dim, output_dim):
    # Deterministic synthetic init (PyTorch-style uniform fan-in bounds).
    k1, k2, k3, k4 = jax.random.split(key, 4)
    bound1 = 1.0 / jnp.sqrt(input_dim)
    bound2 = 1.0 / jnp.sqrt(HIDDEN)
    w1 = jax.random.uniform(k1, (input_dim, HIDDEN), jnp.float32, -bound1, bound1)
    b1 = jax.random.uniform(k2, (1, HIDDEN), jnp.float32, -bound1, bound1)
    w2 = jax.random.uniform(k3, (HIDDEN, output_dim), jnp.float32, -bound2, bound2)
    b2 = jax.random.uniform(k4, (1, output_dim), jnp.float32, -bound2, bound2)
    return w1, b1, w2, b2


def _reference(x, w1, b1, w2, b2):
    h = jnp.maximum(x @ w1 + b1, 0.0)
    return jax.nn.softmax(h @ w2 + b2, axis=-1)


if __name__ == "__main__":
    key = jax.random.PRNGKey(0)
    k_x, k_x2, k_p = jax.random.split(key, 3)

    input_dim, output_dim = 16, 4
    w1, b1, w2, b2 = init_params(k_p, input_dim, output_dim)

    # --- small batch: exercises the grid-less full-VMEM path ---
    batch = 8
    x = jax.random.normal(k_x, (batch, input_dim), jnp.float32)
    out = jax.block_until_ready(policy_network_forward(x, w1, b1, w2, b2))
    ref = _reference(x, w1, b1, w2, b2)
    assert out.shape == (batch, output_dim)
    # bf16 MXU feeds + approx reciprocal -> relaxed tolerances
    assert jnp.allclose(out, ref, atol=2e-2, rtol=0), float(jnp.abs(out - ref).max())
    assert jnp.allclose(jnp.sum(out, axis=-1), 1.0, atol=1e-2)

    # --- larger batch with a small row block: exercises the tiled/parallel path ---
    batch2 = 40
    x2 = jax.random.normal(k_x2, (batch2, input_dim), jnp.float32)
    out2 = jax.block_until_ready(
        policy_network_forward(x2, w1, b1, w2, b2, block_rows=16))
    ref2 = _reference(x2, w1, b1, w2, b2)
    assert out2.shape == (batch2, output_dim)
    assert jnp.allclose(out2, ref2, atol=2e-2, rtol=0), float(jnp.abs(out2 - ref2).max())
    assert jnp.allclose(jnp.sum(out2, axis=-1), 1.0, atol=1e-2)

    print("KERNEL_OK")
</pallas_src>

<mosaic_0001>
module attributes {stable_mosaic.version = 11 : i64} {
  func.func @policy_kernel(%arg0: memref<8x16xf32, #tpu.memory_space<vmem>>, %arg1: memref<16x128xbf16, #tpu.memory_space<vmem>>, %arg2: memref<1x128xf32, #tpu.memory_space<vmem>>, %arg3: memref<128x128xbf16, #tpu.memory_space<vmem>>, %arg4: memref<1x128xf32, #tpu.memory_space<vmem>>, %arg5: memref<8x128xf32, #tpu.memory_space<vmem>>) attributes {dimension_semantics = [], scalar_prefetch = 0 : i64, scratch_operands = 0 : i64, tpu.core_type = #tpu.core_type<tc>} {
    %c0 = arith.constant 0 : index
    %c0_0 = arith.constant 0 : index
    %0 = vector.load %arg0[%c0, %c0_0] : memref<8x16xf32, #tpu.memory_space<vmem>>, vector<8x16xf32>
    %1 = arith.truncf %0 : vector<8x16xf32> to vector<8x16xbf16>
    %c0_1 = arith.constant 0 : index
    %c0_2 = arith.constant 0 : index
    %2 = vector.load %arg1[%c0_1, %c0_2] : memref<16x128xbf16, #tpu.memory_space<vmem>>, vector<16x128xbf16>
    %cst = arith.constant dense<0.000000e+00> : vector<8x128xf32>
    %3 = tpu.matmul %1, %2, %cst {dimension_numbers = #tpu.dot_dimension_numbers<[1], [0], [0], [1], [0, 0, 1, 1], [], []>} : vector<8x16xbf16>, vector<16x128xbf16>, vector<8x128xf32> -> vector<8x128xf32>
    %c0_3 = arith.constant 0 : index
    %c0_4 = arith.constant 0 : index
    %4 = vector.load %arg2[%c0_3, %c0_4] : memref<1x128xf32, #tpu.memory_space<vmem>>, vector<1x128xf32>
    %5 = vector.broadcast %4 : vector<1x128xf32> to vector<8x128xf32>
    %6 = arith.addf %3, %5 : vector<8x128xf32>
    %cst_5 = arith.constant 0.000000e+00 : f32
    %7 = vector.broadcast %cst_5 : f32 to vector<8x128xf32>
    %8 = arith.maximumf %6, %7 : vector<8x128xf32>
    %9 = arith.truncf %8 : vector<8x128xf32> to vector<8x128xbf16>
    %c0_6 = arith.constant 0 : index
    %c0_7 = arith.constant 0 : index
    %10 = vector.load %arg3[%c0_6, %c0_7] : memref<128x128xbf16, #tpu.memory_space<vmem>>, vector<128x128xbf16>
    %cst_8 = arith.constant dense<0.000000e+00> : vector<8x128xf32>
    %11 = tpu.matmul %9, %10, %cst_8 {dimension_numbers = #tpu.dot_dimension_numbers<[1], [0], [0], [1], [0, 0, 1, 1], [], []>} : vector<8x128xbf16>, vector<128x128xbf16>, vector<8x128xf32> -> vector<8x128xf32>
    %c0_9 = arith.constant 0 : index
    %c0_10 = arith.constant 0 : index
    %12 = vector.load %arg4[%c0_9, %c0_10] : memref<1x128xf32, #tpu.memory_space<vmem>>, vector<1x128xf32>
    %13 = vector.broadcast %12 : vector<1x128xf32> to vector<8x128xf32>
    %14 = arith.addf %11, %13 : vector<8x128xf32>
    %cst_11 = arith.constant dense<0xFF800000> : vector<8xf32>
    %15 = vector.multi_reduction <maximumf>, %14, %cst_11 [1] : vector<8x128xf32> to vector<8xf32>
    %16 = vector.shape_cast %15 : vector<8xf32> to vector<8x1xf32>
    %17 = vector.broadcast %16 : vector<8x1xf32> to vector<8x128xf32>
    %18 = arith.subf %14, %17 : vector<8x128xf32>
    %19 = math.exp %18 : vector<8x128xf32>
    %cst_12 = arith.constant dense<0.000000e+00> : vector<8xf32>
    %20 = vector.multi_reduction <add>, %19, %cst_12 [1] : vector<8x128xf32> to vector<8xf32>
    %21 = vector.shape_cast %20 : vector<8xf32> to vector<8x1xf32>
    %22 = tpu.reciprocal %21 {approx = true} : vector<8x1xf32> -> vector<8x1xf32>
    %23 = vector.broadcast %22 : vector<8x1xf32> to vector<8x128xf32>
    %24 = arith.mulf %19, %23 : vector<8x128xf32>
    %c0_13 = arith.constant 0 : index
    %c0_14 = arith.constant 0 : index
    %25 = vector.load %arg5[%c0_13, %c0_14] : memref<8x128xf32, #tpu.memory_space<vmem>>, vector<8x128xf32>
    tpu.vector_store %arg5[%c0_13, %c0_14], %24 {strides = array<i32>} : memref<8x128xf32, #tpu.memory_space<vmem>>, vector<8x128xf32>,
    return
  }
}

</mosaic_0001>

<llo_original>
// kernel: tpu_custom_call.1
$region0: #{tpu_custom_call.1}
  #allocation0 [shape = 'u32[]', space=smem, size = 0x4, offset = 0x4, fixed_abs, tag = 'smem constant byte address 0x4 - core index']
  #allocation1 [shape = 'u32[144,128]{1,0:T(1,128)}', space=vmem, size = 0x12000, scoped, tag = 'internal scratch']
  %s0 = inlined_call_operand.hbm [shape: f32[8,16], index: 0, kind: input, shape index: {}]
  %s1 = inlined_call_operand.hbm [shape: bf16[16,128], index: 1, kind: input, shape index: {}]
  %s2 = inlined_call_operand.vmem [shape: f32[1,128], index: 2, kind: input, shape index: {}]
  %s3 = inlined_call_operand.hbm [shape: bf16[128,128], index: 3, kind: input, shape index: {}]
  %s4 = inlined_call_operand.vmem [shape: f32[1,128], index: 4, kind: input, shape index: {}]
  %s5 = inlined_call_operand.hbm [shape: f32[8,128], index: 5, kind: output, shape index: {}]
  %s6 = sld [smem:[#allocation0]]
  $region42: #{tpu_custom_call.1} parent=0
    _
  %s8 = ssub.s32 1, %s6
  %s9 = scalar_select 0, %s8, %s6
  $region1: #{tpu_custom_call.1} parent=0
    #allocation2 [shape = 'u8[4096]{0}', space=vmem, size = 0x1000, scoped, tag = 'input window, operand 0, single buffered']
    #allocation3 [shape = 's32[1]{0}', space=sflag, size = 0x4, scoped, tag = 'scoped memory for tpu_custom_call.1']
    #allocation4 [shape = 's32[1]{0}', space=sflag, size = 0x4, scoped, tag = 'scoped memory for tpu_custom_call.1']
    #allocation5 [shape = 'u8[4096]{0}', space=vmem, size = 0x1000, scoped, tag = 'input window, operand 1, single buffered']
    #allocation6 [shape = 's32[1]{0}', space=sflag, size = 0x4, scoped, tag = 'scoped memory for tpu_custom_call.1']
    #allocation7 [shape = 'u8[32768]{0}', space=vmem, size = 0x8000, scoped, tag = 'input window, operand 3, single buffered']
    #allocation8 [shape = 'u8[4096]{0}', space=vmem, size = 0x1000, scoped, tag = 'output window, operand 0, single buffered']
    %10 = vsyncpa [#allocation3], 0
    %11 = vsyncpa [#allocation6], 0
    %12 = vsyncpa [#allocation4], 0
    // Predicated region
    $region2: #{tpu_custom_call.1} parent=1 // pred_check
      _
    $region3: #{tpu_custom_call.1} parent=1 // pred_check_branch
      %14 = sbr.rel (0) target = $region5
    $region4: #{tpu_custom_call.1} parent=1 // pred_region
      %s16 = ssub.s32 128, 128
      %17 = vsyncadd [#allocation3], %s16
      %s19 = sshll.u32 [#allocation2], 4
      %s20 = int_to_ptr.vmem [resolvable:$true] %s19
      %22 = dma.hbm_to_vmem [thread:$0]  %s0, 128, %s20, [#allocation3]
    $region5: #{tpu_custom_call.1} parent=1 // pred_fallthru
      _
    // Predicated region
    $region6: #{tpu_custom_call.1} parent=1 // pred_check
      _
    $region7: #{tpu_custom_call.1} parent=1 // pred_check_branch
      %24 = sbr.rel (0) target = $region9
    $region8: #{tpu_custom_call.1} parent=1 // pred_region
      %s26 = ssub.s32 128, 128
      %27 = vsyncadd [#allocation6], %s26
      %s28 = sshll.u32 [#allocation5], 4
      %s29 = int_to_ptr.vmem [resolvable:$true] %s28
      %34 = dma.hbm_to_vmem [thread:$0]  %s1, 128, %s29, [#allocation6], 64, 64, 4
    $region9: #{tpu_custom_call.1} parent=1 // pred_fallthru
      _
    // Predicated region
    $region10: #{tpu_custom_call.1} parent=1 // pred_check
      _
    $region11: #{tpu_custom_call.1} parent=1 // pred_check_branch
      %36 = sbr.rel (0) target = $region13
    $region12: #{tpu_custom_call.1} parent=1 // pred_region
      _
    $region13: #{tpu_custom_call.1} parent=1 // pred_fallthru
      _
    // Predicated region
    $region14: #{tpu_custom_call.1} parent=1 // pred_check
      _
    $region15: #{tpu_custom_call.1} parent=1 // pred_check_branch
      %38 = sbr.rel (0) target = $region17
    $region16: #{tpu_custom_call.1} parent=1 // pred_region
      %s40 = ssub.s32 1024, 1024
      %41 = vsyncadd [#allocation6], %s40
      %s42 = sshll.u32 [#allocation7], 4
      %s43 = int_to_ptr.vmem [resolvable:$true] %s42
      %48 = dma.hbm_to_vmem [thread:$0]  %s3, 1024, %s43, [#allocation6], 64, 64, 4
    $region17: #{tpu_custom_call.1} parent=1 // pred_fallthru
      _
    // Predicated region
    $region18: #{tpu_custom_call.1} parent=1 // pred_check
      _
    $region19: #{tpu_custom_call.1} parent=1 // pred_check_branch
      %50 = sbr.rel (0) target = $region21
    $region20: #{tpu_custom_call.1} parent=1 // pred_region
      _
    $region21: #{tpu_custom_call.1} parent=1 // pred_fallthru
      _
    // Predicated region
    $region22: #{tpu_custom_call.1} parent=1 // pred_check
      _
    $region23: #{tpu_custom_call.1} parent=1 // pred_check_branch
      %52 = sbr.rel (0) target = $region25
    $region24: #{tpu_custom_call.1} parent=1 // pred_region
      %53 = dma.done [#allocation3], 128
    $region25: #{tpu_custom_call.1} parent=1 // pred_fallthru
      _
    // Predicated region
    $region26: #{tpu_custom_call.1} parent=1 // pred_check
      _
    $region27: #{tpu_custom_call.1} parent=1 // pred_check_branch
      %55 = sbr.rel (0) target = $region29
    $region28: #{tpu_custom_call.1} parent=1 // pred_region
      %56 = dma.done [#allocation6], 128
    $region29: #{tpu_custom_call.1} parent=1 // pred_fallthru
      _
    // Predicated region
    $region30: #{tpu_custom_call.1} parent=1 // pred_check
      _
    $region31: #{tpu_custom_call.1} parent=1 // pred_check_branch
      %58 = sbr.rel (0) target = $region33
    $region32: #{tpu_custom_call.1} parent=1 // pred_region
      %59 = dma.done [#allocation6], 1024
    $region33: #{tpu_custom_call.1} parent=1 // pred_fallthru
      _
    %v61 = vld [vmem:[#allocation2] sm:$0xff]
    %v62 = vpack.c.bf16 %v61, %v61
    %v63 = vld [vmem:[#allocation5] sm:$0xf]
    %v64 = vld [vmem:[#allocation5 + $0x4] sm:$0xf]
    %v65 = vld [vmem:[%s2] sm:$0x1]
    %v67 = vlaneseq
    %v68 = vshrl.u32 %v67, 7
    %v69 = vsub.s32 0, %v68
    %v70 = vrot.slane %v65, %v69
    %v74 = vunpack.c.l.b16 %v63
    %v75 = vunpack.c.l.b16 %v64
    %v76 = vpack.c.b16 %v75, %v74
    %vm78 = vcmask 130048
    %v80 = vsel %vm78, %v62, 0
    %82 = vmatprep.subr.bf16.mxu0 0
    %83 = vmatpush1.bf16.msra.mxu0 0
    %84 = vmatprep.subr.bf16.mxu0 0
    %85 = vmatpush1.bf16.msra.mxu0 0
    %86 = vmatprep.subr.bf16.mxu0 0
    %87 = vmatpush1.bf16.msra.mxu0 0
    %88 = vmatprep.subr.bf16.mxu0 0
    %89 = vmatpush1.bf16.msra.mxu0 0
    %90 = vmatprep.subr.bf16.mxu0 0
    %91 = vmatpush1.bf16.msra.mxu0 0
    %92 = vmatprep.subr.bf16.mxu0 0
    %93 = vmatpush1.bf16.msra.mxu0 0
    %94 = vmatprep.subr.bf16.mxu0 0
    %95 = vmatpush1.bf16.msra.mxu0 0
    %96 = vmatprep.subr.bf16.mxu0 0
    %97 = vmatpush1.bf16.msra.mxu0 %v76
    %98 = vmatprep.subr.bf16.mxu0 0
    %99 = vmatpush2.bf16.msra.mxu0 0
    %100 = vmatprep.subr.bf16.mxu0 0
    %101 = vmatpush2.bf16.msra.mxu0 0
    %102 = vmatprep.subr.bf16.mxu0 0
    %103 = vmatpush2.bf16.msra.mxu0 0
    %104 = vmatprep.subr.bf16.mxu0 0
    %105 = vmatpush2.bf16.msra.mxu0 0
    %106 = vmatprep.subr.bf16.mxu0 0
    %107 = vmatpush2.bf16.msra.mxu0 0
    %108 = vmatprep.subr.bf16.mxu0 0
    %109 = vmatpush2.bf16.msra.mxu0 0
    %110 = vmatprep.subr.bf16.mxu0 0
    %111 = vmatpush2.bf16.msra.mxu0 0
    %112 = vmatprep.subr.bf16.mxu0 0
    %113 = vmatpush2.bf16.msra.mxu0 0
    %114 = vmatprep.mubr.bf16.mxu0 0
    %115 = vmatmul.mubr.bf16.gmra.mxu0 %v80
    %v116 = vpop.f32.mrf.mxu0
    %v117 = vadd.f32 %v70, %v116
    %v118 = vpop.f32.mrf.mxu0
    %v119 = vpop.f32.mrf.mxu0
    %v120 = vpop.f32.mrf.mxu0
    %121 = vdwg.mxu0
    %v122 = vmax.f32 %v117, 0.0
    %v123 = vpack.c.bf16 %v122, %v122
    %v124 = vld [vmem:[#allocation7] sm:$0xf]
    %v125 = vld [vmem:[#allocation7 + $0x4] sm:$0xf]
    %v126 = vld [vmem:[#allocation7 + $0x8] sm:$0xf]
    %v127 = vld [vmem:[#allocation7 + $0xc] sm:$0xf]
    %v128 = vld [vmem:[#allocation7 + $0x10] sm:$0xf]
    %v129 = vld [vmem:[#allocation7 + $0x14] sm:$0xf]
    %v130 = vld [vmem:[#allocation7 + $0x18] sm:$0xf]
    %v131 = vld [vmem:[#allocation7 + $0x1c] sm:$0xf]
    %v132 = vld [vmem:[#allocation7 + $0x20] sm:$0xf]
    %v133 = vld [vmem:[#allocation7 + $0x24] sm:$0xf]
    %v134 = vld [vmem:[#allocation7 + $0x28] sm:$0xf]
    %v135 = vld [vmem:[#allocation7 + $0x2c] sm:$0xf]
    %v136 = vld [vmem:[#allocation7 + $0x30] sm:$0xf]
    %v137 = vld [vmem:[#allocation7 + $0x34] sm:$0xf]
    %v138 = vld [vmem:[#allocation7 + $0x38] sm:$0xf]
    %v139 = vld [vmem:[#allocation7 + $0x3c] sm:$0xf]
    %v140 = vld [vmem:[%s4] sm:$0x1]
    %v142 = vlaneseq
    %v143 = vshrl.u32 %v142, 7
    %v144 = vsub.s32 0, %v143
    %v145 = vrot.slane %v140, %v144
    %v163 = vunpack.c.l.b16 %v124
    %v164 = vunpack.c.l.b16 %v125
    %v165 = vunpack.c.l.b16 %v126
    %v166 = vunpack.c.l.b16 %v127
    %v167 = vunpack.c.l.b16 %v128
    %v168 = vunpack.c.l.b16 %v129
    %v169 = vunpack.c.l.b16 %v130
    %v170 = vunpack.c.l.b16 %v131
    %v171 = vunpack.c.l.b16 %v132
    %v172 = vunpack.c.l.b16 %v133
    %v173 = vunpack.c.l.b16 %v134
    %v174 = vunpack.c.l.b16 %v135
    %v175 = vunpack.c.l.b16 %v136
    %v176 = vunpack.c.l.b16 %v137
    %v177 = vunpack.c.l.b16 %v138
    %v178 = vunpack.c.l.b16 %v139
    %v179 = vpack.c.b16 %v164, %v163
    %v180 = vpack.c.b16 %v166, %v165
    %v181 = vpack.c.b16 %v168, %v167
    %v182 = vpack.c.b16 %v170, %v169
    %v183 = vpack.c.b16 %v172, %v171
    %v184 = vpack.c.b16 %v174, %v173
    %v185 = vpack.c.b16 %v176, %v175
    %v186 = vpack.c.b16 %v178, %v177
    %195 = vmatprep.subr.bf16.mxu0 0
    %196 = vmatpush1.bf16.msra.mxu0 %v186
    %197 = vmatprep.subr.bf16.mxu0 0
    %198 = vmatpush1.bf16.msra.mxu0 %v185
    %199 = vmatprep.subr.bf16.mxu0 0
    %200 = vmatpush1.bf16.msra.mxu0 %v184
    %201 = vmatprep.subr.bf16.mxu0 0
    %202 = vmatpush1.bf16.msra.mxu0 %v183
    %203 = vmatprep.subr.bf16.mxu0 0
    %204 = vmatpush1.bf16.msra.mxu0 %v182
    %205 = vmatprep.subr.bf16.mxu0 0
    %206 = vmatpush1.bf16.msra.mxu0 %v181
    %207 = vmatprep.subr.bf16.mxu0 0
    %208 = vmatpush1.bf16.msra.mxu0 %v180
    %209 = vmatprep.subr.bf16.mxu0 0
    %210 = vmatpush1.bf16.msra.mxu0 %v179
    %211 = vmatprep.subr.bf16.mxu0 0
    %212 = vmatpush2.bf16.msra.mxu0 0
    %213 = vmatprep.subr.bf16.mxu0 0
    %214 = vmatpush2.bf16.msra.mxu0 0
    %215 = vmatprep.subr.bf16.mxu0 0
    %216 = vmatpush2.bf16.msra.mxu0 0
    %217 = vmatprep.subr.bf16.mxu0 0
    %218 = vmatpush2.bf16.msra.mxu0 0
    %219 = vmatprep.subr.bf16.mxu0 0
    %220 = vmatpush2.bf16.msra.mxu0 0
    %221 = vmatprep.subr.bf16.mxu0 0
    %222 = vmatpush2.bf16.msra.mxu0 0
    %223 = vmatprep.subr.bf16.mxu0 0
    %224 = vmatpush2.bf16.msra.mxu0 0
    %225 = vmatprep.subr.bf16.mxu0 0
    %226 = vmatpush2.bf16.msra.mxu0 0
    %227 = vmatprep.mubr.bf16.mxu0 0
    %228 = vmatmul.mubr.bf16.gmra.mxu0 %v123
    %v229 = vpop.f32.mrf.mxu0
    %v230 = vadd.f32 %v145, %v229
    %v231 = vpop.f32.mrf.mxu0
    %v232 = vpop.f32.mrf.mxu0
    %v233 = vpop.f32.mrf.mxu0
    %234 = vdwg.mxu0
    %235 = vmax.xlane.f32.xlu0 %v230
    %v236 = vpop.xlane.xlu0 %235
    %v237 = vsub.f32 %v230, %v236
    %v238 = vmul.f32 %v237, 1.442695
    %v239 = vpow.pop %v238
    %240 = vadd.xlane.f32.xlu0 %v239
    %v241 = vpop.xlane.xlu0 %240
    %v242 = vrcp.pop %v241
    %v243 = vmul.f32 %v239, %v242
    %244 = vst [vmem:[#allocation8] sm:$0xff] %v243
    // Predicated region
    $region34: #{tpu_custom_call.1} parent=1 // pred_check
      _
    $region35: #{tpu_custom_call.1} parent=1 // pred_check_branch
      %246 = sbr.rel (0) target = $region37
    $region36: #{tpu_custom_call.1} parent=1 // pred_region
      %s248 = ssub.s32 128, 128
      %249 = vsyncadd [#allocation4], %s248
      %s251 = sshll.u32 [#allocation8], 4
      %s252 = int_to_ptr.vmem [resolvable:$true] %s251
      %254 = dma.vmem_to_hbm [thread:$0]  %s252, 128, %s5, [#allocation4]
    $region37: #{tpu_custom_call.1} parent=1 // pred_fallthru
      _
    // Predicated region
    $region38: #{tpu_custom_call.1} parent=1 // pred_check
      _
    $region39: #{tpu_custom_call.1} parent=1 // pred_check_branch
      %256 = sbr.rel (0) target = $region41
    $region40: #{tpu_custom_call.1} parent=1 // pred_region
      %257 = dma.done [#allocation4], 128
    $region41: #{tpu_custom_call.1} parent=1 // pred_fallthru
      _
    %258 = vsyncpa [#allocation3], 1
    %259 = vsyncpa [#allocation6], 1
    %260 = vsyncpa [#allocation4], 1

</llo_original>
